<compile_context>
chip_gen: v7x
topology: tpu7x:2x2x1
jax: 0.10.0
libtpu: 0.0.40
codegen_flags: <defaults>
</compile_context>

<pallas_src>
import functools

import jax
import jax.numpy as jnp
from jax.experimental import pallas as pl
from jax.experimental.pallas import tpu as pltpu


def _cdiv(a, b):
    return -(-a // b)


def _int_pow(x, n):
    """x**n for a static non-negative integer n, unrolled at trace time (VPU muls only)."""
    if n == 0:
        return jnp.ones_like(x)
    result = None
    base = x
    while n:
        if n & 1:
            result = base if result is None else result * base
        n >>= 1
        if n:
            base = base * base
    return result


def _adaptive_loss_kernel(pre_ref, gt_ref, w_ref, out_ref, acc_ref, *,
                          gamma, gamma_int, lo, hi, coef,
                          batch, tile_b, tiles_per_core, mask_rows):
    c = pl.program_id(0)
    i = pl.program_id(1)

    @pl.when(i == 0)
    def _init():
        acc_ref[...] = jnp.zeros_like(acc_ref)

    pre = pre_ref[...].astype(jnp.float32)        # (TB, C)
    gt = gt_ref[...]                              # (TB, 1) int32
    weight = w_ref[...].astype(jnp.float32)       # (TB, 1) = alpha[gt], gathered in wrapper

    # --- log-softmax pieces (no (TB, C) log_softmax tensor is materialized) ---
    m = jnp.max(pre, axis=1, keepdims=True)                          # (TB, 1)
    shifted = pre - m                                                # (TB, C)
    lse = jnp.log(jnp.sum(jnp.exp(shifted), axis=1, keepdims=True))  # (TB, 1)

    # --- one_hot via lane-iota compare; used only for the target-logit pick ---
    col = jax.lax.broadcasted_iota(jnp.int32, shifted.shape, 1)      # (TB, C)
    one_hot = (col == gt).astype(jnp.float32)                        # (TB, C)

    sum_shifted = jnp.sum(shifted, axis=1, keepdims=True)            # (TB, 1)
    tgt_shifted = jnp.sum(one_hot * shifted, axis=1, keepdims=True)  # (TB, 1) = shifted[gt]

    # Fused label-smoothed cross-entropy:
    #   smoothing_gt = clip(one_hot, lo, hi) = lo + (hi - lo) * one_hot   (valid for 0<=lo<=hi<=1)
    #   ce = -sum((shifted - lse) * smoothing_gt, axis=1)
    #      = lse*(lo*(C-1)+hi) - lo*sum(shifted) - (hi-lo)*shifted[gt]
    ce = lse * coef - lo * sum_shifted - (hi - lo) * tgt_shifted     # (TB, 1)

    pt = jnp.exp(-ce)
    one_minus_pt = 1.0 - pt
    if gamma_int is not None:
        focal = _int_pow(one_minus_pt, gamma_int)    # integral gamma: pure VPU multiplies
    else:
        focal = one_minus_pt ** gamma                # non-integral: EUP exp/log path
    adap = weight * focal * ce                                       # (TB, 1)

    if mask_rows:
        # Global (unclamped) tile index -> global row index; zero out padded / phantom rows.
        t = c * tiles_per_core + i
        row = t * tile_b + jax.lax.broadcasted_iota(jnp.int32, adap.shape, 0)
        adap = jnp.where(row < batch, adap, 0.0)

    acc_ref[...] += jnp.sum(adap).reshape(1, 1)

    @pl.when(i == pl.num_programs(1) - 1)
    def _finalize():
        # Lane-dense (1, 128) output block per core; wrapper reads lane 0 of each block.
        out_ref[...] = jnp.broadcast_to(acc_ref[...], out_ref.shape)


def adaptive_loss_pallas(pre, gt, alpha, *, gamma, smoothing_rate, num_class,
                         max_tile_b=None):
    """pre: (B, C) float, gt: (B,) int, alpha: (C,) float -> scalar f32 loss."""
    B, C = pre.shape
    assert 0.0 <= float(smoothing_rate) <= 1.0, "smoothing_rate must be in [0, 1]"

    gt2 = gt.reshape(B, 1).astype(jnp.int32)
    # Hoisted alpha gather: tiny O(B) XLA gather, saves a (TB,C) multiply + reduce per tile.
    weight = jnp.take(alpha.astype(jnp.float32), gt).reshape(B, 1)

    itemsize = jnp.dtype(pre.dtype).itemsize
    sub = {4: 8, 2: 16, 1: 32}.get(itemsize, 8)          # dtype-native sublane multiple

    # ---- generation-aware VMEM budgeting (lane-padded accounting) ----
    try:
        vmem_cap = int(pltpu.get_tpu_info().vmem_capacity_bytes)
    except Exception:
        vmem_cap = 64 * 1024 * 1024                      # conservative fallback
    small_vmem = vmem_cap <= 64 * 1024 * 1024            # v7x-class parts
    per_buf_budget = (14 if small_vmem else 22) * 1024 * 1024

    c_pad = max(128, _cdiv(C, 128) * 128)                # lane dim pads to 128
    # per-row VMEM bytes: pre row (lane-padded) + gt row + weight row (each (tb,1) pads to 128 lanes)
    row_bytes = c_pad * itemsize + 2 * 128 * 4
    rows_fit = max(sub, (per_buf_budget // row_bytes) // sub * sub)

    # Aim for >= 2 batch tiles so both v7x TensorCores get work (harmless on 1-TC parts).
    half = max(sub, _cdiv(_cdiv(B, 2), sub) * sub)

    tb = min(B, rows_fit, half)
    if max_tile_b is not None:
        tb = min(tb, int(max_tile_b))
    if tb < B:
        tb = max(sub, (tb // sub) * sub)
        if tb >= B:
            tb = B

    total_tiles = _cdiv(B, tb)
    num_cores = 2 if total_tiles >= 2 else 1
    tiles_per_core = _cdiv(total_tiles, num_cores)
    mask_rows = (num_cores * tiles_per_core * tb) != B
    has_phantom = num_cores * tiles_per_core > total_tiles

    if has_phantom:
        def data_map(c, i, _tpc=tiles_per_core, _last=total_tiles - 1):
            return (jnp.minimum(c * _tpc + i, _last), 0)
    else:
        def data_map(c, i, _tpc=tiles_per_core):
            return (c * _tpc + i, 0)

    g = float(gamma)
    gamma_int = int(g) if (g.is_integer() and g >= 0.0) else None
    lo = float(smoothing_rate) / float(num_class)
    hi = 1.0 - float(smoothing_rate) * (1.0 - 1.0 / float(num_class))
    coef = lo * (C - 1) + hi

    kernel = functools.partial(
        _adaptive_loss_kernel,
        gamma=g, gamma_int=gamma_int, lo=lo, hi=hi, coef=coef,
        batch=int(B), tile_b=int(tb), tiles_per_core=int(tiles_per_core),
        mask_rows=bool(mask_rows),
    )

    # vmem_limit: double-buffered inputs (lane-padded) + headroom, capped per generation.
    est = 2 * tb * row_bytes + 4 * 1024 * 1024
    cap = (48 if small_vmem else 100) * 1024 * 1024
    vmem_limit = int(min(cap, max(16 * 1024 * 1024, est)))

    cost = pl.CostEstimate(
        flops=int(10 * B * C + 20 * B),
        transcendentals=int(B * C + 3 * B),
        bytes_accessed=int(B * C * itemsize + 2 * B * 4 + num_cores * 128 * 4),
    )

    out = pl.pallas_call(
        kernel,
        out_shape=jax.ShapeDtypeStruct((1, num_cores * 128), jnp.float32),
        grid_spec=pltpu.PrefetchScalarGridSpec(
            num_scalar_prefetch=0,
            grid=(num_cores, tiles_per_core),
            in_specs=[
                pl.BlockSpec((tb, C), data_map),     # pre tile (pipelined)
                pl.BlockSpec((tb, 1), data_map),     # gt tile
                pl.BlockSpec((tb, 1), data_map),     # weight = alpha[gt] tile
            ],
            out_specs=pl.BlockSpec((1, 128), lambda c, i: (0, c)),  # per-core lane-dense block
            scratch_shapes=[pltpu.VMEM((1, 1), jnp.float32)],
        ),
        compiler_params=pltpu.CompilerParams(
            dimension_semantics=("parallel", "arbitrary"),
            vmem_limit_bytes=vmem_limit,
        ),
        cost_estimate=cost,
    )(pre, gt2, weight)

    partials = out.reshape(num_cores, 128)[:, 0]          # one scalar partial per core
    return (jnp.sum(partials) / jnp.float32(B)).astype(jnp.float32)


def adaptive_loss_ref(pre, gt, alpha, *, gamma, smoothing_rate, num_class):
    """Pure-JAX reference mirroring the PyTorch forward (for verification)."""
    log_sm = jax.nn.log_softmax(pre.astype(jnp.float32), axis=1)
    one_hot = jax.nn.one_hot(gt, num_class, dtype=jnp.float32)
    lo = smoothing_rate / num_class
    hi = 1.0 - smoothing_rate * (1.0 - 1.0 / num_class)
    smoothing_gt = jnp.clip(one_hot, lo, hi)
    weight = alpha[gt]
    ce = -jnp.sum(log_sm * smoothing_gt, axis=1)
    pt = jnp.exp(-ce)
    return jnp.mean(weight * (1.0 - pt) ** gamma * ce)


if __name__ == "__main__":
    key = jax.random.PRNGKey(0)
    gamma = 2.0
    smoothing_rate = 0.1

    # --- Small shapes consistent with the module: batch=8, num_class=32 (single tile) ---
    B, C = 8, 32
    k1, k2, k3 = jax.random.split(key, 3)
    pre = jax.random.normal(k1, (B, C), dtype=jnp.float32)
    gt = jax.random.randint(k2, (B,), 0, C, dtype=jnp.int32)
    alpha = jax.random.uniform(k3, (C,), dtype=jnp.float32, minval=0.25, maxval=1.0)

    loss = adaptive_loss_pallas(
        pre, gt, alpha, gamma=gamma, smoothing_rate=smoothing_rate, num_class=C
    )
    loss = jax.block_until_ready(loss)
    ref = adaptive_loss_ref(
        pre, gt, alpha, gamma=gamma, smoothing_rate=smoothing_rate, num_class=C
    )
    assert jnp.allclose(loss, ref, rtol=1e-4, atol=1e-5), (loss, ref)

    # --- Default sizing path: 2-way core-parallel split, no masking (B=272 -> 2 tiles of 136) ---
    B2 = 272
    k4, k5 = jax.random.split(k1, 2)
    pre2 = jax.random.normal(k4, (B2, C), dtype=jnp.float32)
    gt2 = jax.random.randint(k5, (B2,), 0, C, dtype=jnp.int32)
    loss2 = adaptive_loss_pallas(
        pre2, gt2, alpha, gamma=gamma, smoothing_rate=smoothing_rate, num_class=C
    )
    loss2 = jax.block_until_ready(loss2)
    ref2 = adaptive_loss_ref(
        pre2, gt2, alpha, gamma=gamma, smoothing_rate=smoothing_rate, num_class=C
    )
    assert jnp.allclose(loss2, ref2, rtol=1e-4, atol=1e-5), (loss2, ref2)

    # --- Forced small tiles: multi-step accumulation + ragged last tile + phantom tile ---
    loss3 = adaptive_loss_pallas(
        pre2, gt2, alpha, gamma=gamma, smoothing_rate=smoothing_rate, num_class=C,
        max_tile_b=64,
    )
    loss3 = jax.block_until_ready(loss3)
    assert jnp.allclose(loss3, ref2, rtol=1e-4, atol=1e-5), (loss3, ref2)

    print("KERNEL_OK")
</pallas_src>

<mosaic_0001>
module attributes {stable_mosaic.version = 11 : i64} {
  func.func @_adaptive_loss_kernel(%arg0: i32, %arg1: i32, %arg2: memref<8x32xf32, #tpu.memory_space<vmem>>, %arg3: memref<8x1xi32, #tpu.memory_space<vmem>>, %arg4: memref<8x1xf32, #tpu.memory_space<vmem>>, %arg5: memref<1x128xf32, #tpu.memory_space<vmem>>, %arg6: memref<1x1xf32, #tpu.memory_space<vmem>>) attributes {dimension_semantics = [#tpu.dimension_semantics<parallel>, #tpu.dimension_semantics<arbitrary>], iteration_bounds = array<i64: 1, 1>, scalar_prefetch = 0 : i64, scratch_operands = 1 : i64, tpu.core_type = #tpu.core_type<tc>, window_params = [{transform_indices = @transform_0, window_bounds = array<i64: 8, 32>}, {transform_indices = @transform_1, window_bounds = array<i64: 8, 1>}, {transform_indices = @transform_2, window_bounds = array<i64: 8, 1>}, {transform_indices = @transform_3, window_bounds = array<i64: 1, 128>}]} {
    %c0_i32 = arith.constant 0 : i32
    %0 = arith.cmpi eq, %arg1, %c0_i32 : i32
    %1 = arith.extui %0 : i1 to i32
    %c0_i32_0 = arith.constant 0 : i32
    %2 = arith.cmpi ne, %1, %c0_i32_0 : i32
    scf.if %2 {
      %cst_21 = arith.constant 0.000000e+00 : f32
      %51 = vector.broadcast %cst_21 : f32 to vector<1x1xf32>
      %c0_22 = arith.constant 0 : index
      %c0_23 = arith.constant 0 : index
      %52 = vector.load %arg6[%c0_22, %c0_23] : memref<1x1xf32, #tpu.memory_space<vmem>>, vector<1x1xf32>
      tpu.vector_store %arg6[%c0_22, %c0_23], %51 {strides = array<i32>} : memref<1x1xf32, #tpu.memory_space<vmem>>, vector<1x1xf32>,
    } else {
    }
    %c0 = arith.constant 0 : index
    %c0_1 = arith.constant 0 : index
    %3 = vector.load %arg2[%c0, %c0_1] : memref<8x32xf32, #tpu.memory_space<vmem>>, vector<8x32xf32>
    %c0_2 = arith.constant 0 : index
    %c0_3 = arith.constant 0 : index
    %4 = vector.load %arg3[%c0_2, %c0_3] : memref<8x1xi32, #tpu.memory_space<vmem>>, vector<8x1xi32>
    %c0_4 = arith.constant 0 : index
    %c0_5 = arith.constant 0 : index
    %5 = vector.load %arg4[%c0_4, %c0_5] : memref<8x1xf32, #tpu.memory_space<vmem>>, vector<8x1xf32>
    %cst = arith.constant dense<0xFF800000> : vector<8xf32>
    %6 = vector.multi_reduction <maximumf>, %3, %cst [1] : vector<8x32xf32> to vector<8xf32>
    %7 = vector.shape_cast %6 : vector<8xf32> to vector<8x1xf32>
    %8 = vector.broadcast %7 : vector<8x1xf32> to vector<8x32xf32>
    %9 = arith.subf %3, %8 : vector<8x32xf32>
    %10 = math.exp %9 : vector<8x32xf32>
    %cst_6 = arith.constant dense<0.000000e+00> : vector<8xf32>
    %11 = vector.multi_reduction <add>, %10, %cst_6 [1] : vector<8x32xf32> to vector<8xf32>
    %12 = vector.shape_cast %11 : vector<8xf32> to vector<8x1xf32>
    %13 = math.log %12 : vector<8x1xf32>
    %14 = tpu.iota {dimensions = array<i32: 1>} : vector<8x32xi32>
    %15 = vector.broadcast %4 : vector<8x1xi32> to vector<8x32xi32>
    %16 = arith.cmpi eq, %14, %15 : vector<8x32xi32>
    %17 = arith.extui %16 : vector<8x32xi1> to vector<8x32xi32>
    %18 = arith.sitofp %17 : vector<8x32xi32> to vector<8x32xf32>
    %cst_7 = arith.constant dense<0.000000e+00> : vector<8xf32>
    %19 = vector.multi_reduction <add>, %9, %cst_7 [1] : vector<8x32xf32> to vector<8xf32>
    %20 = vector.shape_cast %19 : vector<8xf32> to vector<8x1xf32>
    %21 = arith.mulf %18, %9 : vector<8x32xf32>
    %cst_8 = arith.constant dense<0.000000e+00> : vector<8xf32>
    %22 = vector.multi_reduction <add>, %21, %cst_8 [1] : vector<8x32xf32> to vector<8xf32>
    %23 = vector.shape_cast %22 : vector<8xf32> to vector<8x1xf32>
    %cst_9 = arith.constant 1.000000e+00 : f32
    %24 = vector.broadcast %cst_9 : f32 to vector<8x1xf32>
    %25 = arith.mulf %13, %24 : vector<8x1xf32>
    %cst_10 = arith.constant 3.125000e-03 : f32
    %26 = vector.broadcast %cst_10 : f32 to vector<8x1xf32>
    %27 = arith.mulf %26, %20 : vector<8x1xf32>
    %28 = arith.subf %25, %27 : vector<8x1xf32>
    %cst_11 = arith.constant 0.899999976 : f32
    %29 = vector.broadcast %cst_11 : f32 to vector<8x1xf32>
    %30 = arith.mulf %29, %23 : vector<8x1xf32>
    %31 = arith.subf %28, %30 : vector<8x1xf32>
    %cst_12 = arith.constant 0.000000e+00 : f32
    %32 = vector.broadcast %cst_12 : f32 to vector<8x1xf32>
    %33 = arith.subf %32, %31 : vector<8x1xf32>
    %34 = math.exp %33 : vector<8x1xf32>
    %cst_13 = arith.constant 1.000000e+00 : f32
    %35 = vector.broadcast %cst_13 : f32 to vector<8x1xf32>
    %36 = arith.subf %35, %34 : vector<8x1xf32>
    %37 = arith.mulf %36, %36 : vector<8x1xf32>
    %38 = arith.mulf %5, %37 : vector<8x1xf32>
    %39 = arith.mulf %38, %31 : vector<8x1xf32>
    %c0_14 = arith.constant 0 : index
    %c0_15 = arith.constant 0 : index
    %40 = vector.load %arg6[%c0_14, %c0_15] : memref<1x1xf32, #tpu.memory_space<vmem>>, vector<1x1xf32>
    %41 = vector.shape_cast %39 : vector<8x1xf32> to vector<1x8x1xf32>
    %cst_16 = arith.constant dense<0.000000e+00> : vector<1xf32>
    %42 = vector.multi_reduction <add>, %41, %cst_16 [1, 2] : vector<1x8x1xf32> to vector<1xf32>
    %43 = vector.shape_cast %42 : vector<1xf32> to vector<1x1x1xf32>
    %44 = vector.extract %43[0, 0, 0] : f32 from vector<1x1x1xf32>
    %45 = vector.broadcast %44 : f32 to vector<1x1xf32>
    %46 = arith.addf %40, %45 : vector<1x1xf32>
    %c0_17 = arith.constant 0 : index
    %c0_18 = arith.constant 0 : index
    %47 = vector.load %arg6[%c0_17, %c0_18] : memref<1x1xf32, #tpu.memory_space<vmem>>, vector<1x1xf32>
    tpu.vector_store %arg6[%c0_17, %c0_18], %46 {strides = array<i32>} : memref<1x1xf32, #tpu.memory_space<vmem>>, vector<1x1xf32>,
    %c0_i32_19 = arith.constant 0 : i32
    %48 = arith.cmpi eq, %arg1, %c0_i32_19 : i32
    %49 = arith.extui %48 : i1 to i32
    %c0_i32_20 = arith.constant 0 : i32
    %50 = arith.cmpi ne, %49, %c0_i32_20 : i32
    scf.if %50 {
      %c0_21 = arith.constant 0 : index
      %c0_22 = arith.constant 0 : index
      %51 = vector.load %arg6[%c0_21, %c0_22] : memref<1x1xf32, #tpu.memory_space<vmem>>, vector<1x1xf32>
      %52 = vector.shape_cast %51 : vector<1x1xf32> to vector<1x1xf32>
      %53 = vector.broadcast %52 : vector<1x1xf32> to vector<1x128xf32>
      %c0_23 = arith.constant 0 : index
      %c0_24 = arith.constant 0 : index
      %54 = vector.load %arg5[%c0_23, %c0_24] : memref<1x128xf32, #tpu.memory_space<vmem>>, vector<1x128xf32>
      tpu.vector_store %arg5[%c0_23, %c0_24], %53 {strides = array<i32>} : memref<1x128xf32, #tpu.memory_space<vmem>>, vector<1x128xf32>,
    } else {
    }
    return
  }
  func.func @transform_0(%arg0: i32, %arg1: i32) -> (i32, i32) {
    %c1_i32 = arith.constant 1 : i32
    %0 = arith.muli %arg0, %c1_i32 : i32
    %1 = arith.addi %0, %arg1 : i32
    %c0_i32 = arith.constant 0 : i32
    %c0_i32_0 = arith.constant 0 : i32
    return %1, %c0_i32 : i32, i32
  }
  func.func @transform_1(%arg0: i32, %arg1: i32) -> (i32, i32) {
    %c1_i32 = arith.constant 1 : i32
    %0 = arith.muli %arg0, %c1_i32 : i32
    %1 = arith.addi %0, %arg1 : i32
    %c0_i32 = arith.constant 0 : i32
    %c0_i32_0 = arith.constant 0 : i32
    return %1, %c0_i32 : i32, i32
  }
  func.func @transform_2(%arg0: i32, %arg1: i32) -> (i32, i32) {
    %c1_i32 = arith.constant 1 : i32
    %0 = arith.muli %arg0, %c1_i32 : i32
    %1 = arith.addi %0, %arg1 : i32
    %c0_i32 = arith.constant 0 : i32
    %c0_i32_0 = arith.constant 0 : i32
    return %1, %c0_i32 : i32, i32
  }
  func.func @transform_3(%arg0: i32, %arg1: i32) -> (i32, i32) {
    %c0_i32 = arith.constant 0 : i32
    %c0_i32_0 = arith.constant 0 : i32
    return %c0_i32, %arg0 : i32, i32
  }
}

</mosaic_0001>

<llo_original>
// kernel: tpu_custom_call.1
$region0: #{tpu_custom_call.1}
  #allocation0 [shape = 'u32[]', space=smem, size = 0x4, offset = 0x4, fixed_abs, tag = 'smem constant byte address 0x4 - core index']
  #allocation1 [shape = 'u32[144,128]{1,0:T(1,128)}', space=vmem, size = 0x12000, scoped, tag = 'internal scratch']
  #allocation2 [shape = 'f32[1,1]{1,0:T(1,128)}', space=vmem, size = 0x200, scoped, tag = 'scratch operand']
  %s0 = inlined_call_operand.vmem [shape: f32[8,32], index: 0, kind: input, shape index: {}]
  %s1 = inlined_call_operand.vmem [shape: s32[8,1], index: 1, kind: input, shape index: {}]
  %s2 = inlined_call_operand.vmem [shape: f32[8,1], index: 2, kind: input, shape index: {}]
  %s3 = inlined_call_operand.hbm [shape: f32[1,128], index: 3, kind: output, shape index: {}]
  %s4 = sld [smem:[#allocation0]]
  $region30: #{tpu_custom_call.1} parent=0
    _
  %s6 = ssub.s32 1, %s4
  %s7 = scalar_select 0, %s6, %s4
  $region1: #{tpu_custom_call.1} parent=0
    #allocation3 [shape = 'u8[512]{0}', space=vmem, size = 0x400, scoped, tag = 'output window, operand 0, single buffered']
    #allocation4 [shape = 's32[1]{0}', space=sflag, size = 0x4, scoped, tag = 'scoped memory for tpu_custom_call.1']
    %8 = vsyncpa [#allocation4], 0
    // Predicated region
    $region2: #{tpu_custom_call.1} parent=1 // pred_check
      _
    $region3: #{tpu_custom_call.1} parent=1 // pred_check_branch
      %10 = sbr.rel (0) target = $region5
    $region4: #{tpu_custom_call.1} parent=1 // pred_region
      %s11 = sadd.s32 0, 0
      %p12 = scmp.lt.s32.totalorder %s11, 0
      %s13 = scalar_select %p12, %s11, 0
      %s14 = smul.addr %s13, 8
      %s15 = scalar_lea.vmem %s0, %s14
      %s16 = sadd.s32 0, 0
    $region5: #{tpu_custom_call.1} parent=1 // pred_fallthru
      _
    // Predicated region
    $region6: #{tpu_custom_call.1} parent=1 // pred_check
      _
    $region7: #{tpu_custom_call.1} parent=1 // pred_check_branch
      %18 = sbr.rel (0) target = $region9
    $region8: #{tpu_custom_call.1} parent=1 // pred_region
      %s19 = sadd.s32 0, 0
      %p20 = scmp.lt.s32.totalorder %s19, 0
      %s21 = scalar_select %p20, %s19, 0
      %s22 = smul.addr %s21, 8
      %s23 = scalar_lea.vmem %s1, %s22
      %s24 = sadd.s32 0, 0
    $region9: #{tpu_custom_call.1} parent=1 // pred_fallthru
      _
    // Predicated region
    $region10: #{tpu_custom_call.1} parent=1 // pred_check
      _
    $region11: #{tpu_custom_call.1} parent=1 // pred_check_branch
      %26 = sbr.rel (0) target = $region13
    $region12: #{tpu_custom_call.1} parent=1 // pred_region
      %s27 = sadd.s32 0, 0
      %p28 = scmp.lt.s32.totalorder %s27, 0
      %s29 = scalar_select %p28, %s27, 0
      %s30 = smul.addr %s29, 8
      %s31 = scalar_lea.vmem %s2, %s30
      %s32 = sadd.s32 0, 0
    $region13: #{tpu_custom_call.1} parent=1 // pred_fallthru
      _
    %s33 = sadd.s32 0, 0
    %p34 = scmp.lt.s32.totalorder %s33, 0
    %s35 = scalar_select %p34, %s33, 0
    %s36 = smul.addr %s35, 8
    %s37 = scalar_lea.vmem %s0, %s36
    %s38 = sadd.s32 0, 0
    %p39 = scmp.lt.s32.totalorder %s38, 0
    %s40 = scalar_select %p39, %s38, 0
    %s41 = smul.addr %s40, 8
    %s42 = scalar_lea.vmem %s1, %s41
    %s43 = sadd.s32 0, 0
    %p44 = scmp.lt.s32.totalorder %s43, 0
    %s45 = scalar_select %p44, %s43, 0
    %s46 = smul.addr %s45, 8
    %s47 = scalar_lea.vmem %s2, %s46
    %s48 = sadd.s32 0, 0
    %p49 = scmp.lt.s32.totalorder %s48, 0
    %s50 = scalar_select %p49, %s48, 0
    %s51 = smul.addr %s50, 8
    %s52 = scalar_lea.vmem %s0, %s51
    %s53 = sadd.s32 0, 0
    %s54 = sadd.s32 0, 0
    %p55 = scmp.lt.s32.totalorder %s54, 0
    %s56 = scalar_select %p55, %s54, 0
    %s57 = smul.addr %s56, 8
    %s58 = scalar_lea.vmem %s1, %s57
    %s59 = sadd.s32 0, 0
    %s60 = sadd.s32 0, 0
    %p61 = scmp.lt.s32.totalorder %s60, 0
    %s62 = scalar_select %p61, %s60, 0
    %s63 = smul.addr %s62, 8
    %s64 = scalar_lea.vmem %s2, %s63
    %s65 = sadd.s32 0, 0
    %p66 = scmp.eq.s32.totalorder 0, 0
    // Predicated region
    $region14: #{tpu_custom_call.1} parent=1 // pred_check
      %p67 = pneg %p66
    $region15: #{tpu_custom_call.1} parent=1 // pred_check_branch
      %69 = sbr.rel (%p67) target = $region17
    $region16: #{tpu_custom_call.1} parent=1 // pred_region
      %vm70 = vcmask 0
      %71 = vst.msk [vmem:[#allocation2] sm:$0x1] %vm70, 0.0
    $region17: #{tpu_custom_call.1} parent=1 // pred_fallthru
      _
    %v72 = vld [vmem:[%s52] sm:$0xff]
    %v73 = vld [vmem:[%s58] sm:$0xff]
    %v74 = vld [vmem:[%s64] sm:$0xff]
    %vm75 = vcmask 261120
    %v76 = vsel %vm75, %v72, -inf
    %77 = vmax.xlane.f32.xlu0 %v76
    %v78 = vpop.xlane.xlu0 %77
    %v79 = vsub.f32 %v72, %v78
    %v80 = vmul.f32 %v79, 1.442695
    %v81 = vpow.pop %v80
    %v82 = vsel %vm75, %v81, 0.0
    %83 = vadd.xlane.f32.xlu0 %v82
    %v84 = vpop.xlane.xlu0 %83
    %v85 = vlog2.pop %v84
    %v86 = vmul.f32 %v85, 0.6931472
    %v87 = vlaneseq
    %v88 = vand.u32 %v87, 127
    %89 = vset.pattern.permute.xlu0 0
    %90 = vperm.xlu0 %89, %v73
    %v91 = vpop.permute.xlu0 %90
    %vm92 = vcmp.eq.s32.totalorder %v88, %v91
    %v93 = vsel %vm92, 1, 0
    %v94 = vcvt.s32.f32 %v93
    %v95 = vsel %vm75, %v79, 0.0
    %96 = vadd.xlane.f32.xlu0 %v95
    %v97 = vpop.xlane.xlu0 %96
    %v98 = vmul.f32 %v94, %v79
    %v99 = vsel %vm75, %v98, 0.0
    %100 = vadd.xlane.f32.xlu0 %v99
    %v101 = vpop.xlane.xlu0 %100
    %v102 = vmul.f32 %v97, 0.003125
    %v103 = vsub.f32 %v86, %v102
    %v104 = vmul.f32 %v101, 0.9
    %v105 = vsub.f32 %v103, %v104
    %v106 = vsub.f32 0.0, %v105
    %v107 = vmul.f32 %v106, 1.442695
    %v108 = vpow.pop %v107
    %v109 = vsub.f32 1.0, %v108
    %v110 = vmul.f32 %v109, %v109
    %v111 = vmul.f32 %v74, %v110
    %v112 = vmul.f32 %v111, %v105
    %v113 = vld [vmem:[#allocation2] sm:$0x1]
    %vm114 = vcmask 7168
    %v115 = vsel %vm114, %v112, 0.0
    %116 = vadd.xlane.f32.xlu0 %v115
    %v117 = vpop.xlane.xlu0 %116
    %v118 = vrot.slane %v117, 4
    %v119 = vadd.f32 %v117, %v118
    %v120 = vrot.slane %v119, 2
    %v121 = vadd.f32 %v119, %v120
    %v122 = vrot.slane %v121, 1
    %v123 = vadd.f32 %v121, %v122
    %s124 = vtos %v123
    %v125 = vstv %s124
    %v126 = vadd.f32 %v113, %v125
    %vm127 = vcmask 0
    %128 = vst.msk [vmem:[#allocation2] sm:$0x1] %vm127, %v126
    // Predicated region
    $region18: #{tpu_custom_call.1} parent=1 // pred_check
      %p129 = pneg %p66
    $region19: #{tpu_custom_call.1} parent=1 // pred_check_branch
      %131 = sbr.rel (%p129) target = $region21
    $region20: #{tpu_custom_call.1} parent=1 // pred_region
      %v132 = vld [vmem:[#allocation2] sm:$0x1]
      %134 = vset.pattern.permute.xlu0 0
      %135 = vperm.xlu0 %134, %v132
      %v136 = vpop.permute.xlu0 %135
      %v138 = vlaneseq
      %v139 = vshrl.u32 %v138, 7
      %v140 = vsub.s32 0, %v139
      %v141 = vrot.slane %v136, %v140
      %142 = vst [vmem:[#allocation3] sm:$0x1] %v141
    $region21: #{tpu_custom_call.1} parent=1 // pred_fallthru
      _
    // Predicated region
    $region22: #{tpu_custom_call.1} parent=1 // pred_check
      _
    $region23: #{tpu_custom_call.1} parent=1 // pred_check_branch
      %144 = sbr.rel (0) target = $region25
    $region24: #{tpu_custom_call.1} parent=1 // pred_region
      %s146 = ssub.s32 16, 16
      %147 = vsyncadd [#allocation4], %s146
      %s149 = sshll.u32 [#allocation3], 4
      %s150 = int_to_ptr.vmem [resolvable:$true] %s149
      %152 = dma.vmem_to_hbm [thread:$0]  %s150, 16, %s3, [#allocation4]
    $region25: #{tpu_custom_call.1} parent=1 // pred_fallthru
      _
    // Predicated region
    $region26: #{tpu_custom_call.1} parent=1 // pred_check
      _
    $region27: #{tpu_custom_call.1} parent=1 // pred_check_branch
      %154 = sbr.rel (0) target = $region29
    $region28: #{tpu_custom_call.1} parent=1 // pred_region
      %155 = dma.done [#allocation4], 16
    $region29: #{tpu_custom_call.1} parent=1 // pred_fallthru
      _
    %156 = vsyncpa [#allocation4], 1

</llo_original>
